<compile_context>
chip_gen: v7x
topology: tpu7x:2x2x1
jax: 0.10.0
libtpu: 0.0.40
codegen_flags: <defaults>
</compile_context>

<pallas_src>
import jax
import jax.numpy as jnp
from jax.experimental import pallas as pl
from jax.experimental.pallas import tpu as pltpu


def _round_up(x, m):
    return ((x + m - 1) // m) * m


def transition_kernel(x_ref, scale_ref, shift_ref, w_ref, o_ref):
    # x_ref  : (4, TM, Cp)  bf16 -- the 4 quadrant planes of each 2x2 window
    # scale  : (1, Cp)      f32  -- folded BN scale = gamma / sqrt(var + eps)
    # shift  : (1, Cp)      f32  -- folded BN shift = beta - mean * scale
    # w_ref  : (Cp, Cop)    bf16 -- 1x1 conv weight (transposed), 0.25 folded in
    # o_ref  : (TM, Cop)    f32
    tm = x_ref.shape[1]
    cp = x_ref.shape[2]

    # Hoist the per-channel broadcasts once per block (no CSE of
    # broadcast_in_dim if repeated inside the quadrant loop).
    scale = jnp.broadcast_to(scale_ref[...], (tm, cp))
    shift = jnp.broadcast_to(shift_ref[...], (tm, cp))

    # BatchNorm (inference, folded) + ReLU per quadrant in f32 on the VPU,
    # summed => 2x2 sum-pool.  Static 4-way unroll.
    s = jnp.zeros((tm, cp), jnp.float32)
    for q in range(4):
        xq = x_ref[q].astype(jnp.float32)
        s = s + jnp.maximum(xq * scale + shift, 0.0)

    # 1x1 conv == channel matmul on the MXU; bf16 operands, f32 accumulate.
    o_ref[...] = jnp.dot(
        s.astype(jnp.bfloat16), w_ref[...],
        preferred_element_type=jnp.float32,
    ).astype(o_ref.dtype)


def transition_forward(x_nchw, gamma, beta, running_mean, running_var,
                       conv_weight, eps=1e-5):
    """Pallas implementation of Transition.forward. Input/output are NCHW."""
    N, Cin, H, W = x_nchw.shape
    Cout = conv_weight.shape[0]
    assert H % 2 == 0 and W % 2 == 0
    Ho, Wo = H // 2, W // 2
    M = N * Ho * Wo

    # Lane-dense channel padding (multiples of 128).
    Cp = _round_up(Cin, 128)
    Cop = _round_up(Cout, 128)

    f32 = jnp.float32
    # Fold BN into per-channel scale/shift (inference semantics).  Padded
    # channels get scale = shift = 0 => relu(0) = 0 => contribute nothing.
    inv_std = 1.0 / jnp.sqrt(running_var.astype(f32) + eps)
    scale = gamma.astype(f32) * inv_std
    shift = beta.astype(f32) - running_mean.astype(f32) * scale
    scale = jnp.pad(scale, (0, Cp - Cin)).reshape(1, Cp)
    shift = jnp.pad(shift, (0, Cp - Cin)).reshape(1, Cp)

    # (Cout, Cin, 1, 1) -> (Cin, Cout); fold the 2x2-average 0.25 factor in,
    # zero-pad to (Cp, Cop), pre-cast to bf16 (native MXU operand dtype).
    w = jnp.transpose(conv_weight.reshape(Cout, Cin).astype(f32), (1, 0)) * 0.25
    w = jnp.pad(w, ((0, Cp - Cin), (0, Cop - Cout))).astype(jnp.bfloat16)

    # NCHW -> (4, M, Cp) bf16: quadrant planes leading, flattened pooled
    # pixels in the middle (the GEMM M dim), channels on the lane axis.
    # The bf16 cast is fused into the same transpose pass, so the rearranged
    # copy of x is written (and re-read by the kernel) at half width.
    xq = x_nchw
    if Cp != Cin:
        xq = jnp.pad(xq, ((0, 0), (0, Cp - Cin), (0, 0), (0, 0)))
    xq = xq.reshape(N, Cp, Ho, 2, Wo, 2)
    xq = jnp.transpose(xq, (3, 5, 0, 2, 4, 1)).astype(jnp.bfloat16)
    xq = xq.reshape(4, M, Cp)

    # ---- M tiling: big tiles; pad M up rather than shrinking the tile. ----
    TM = 512

    def _buf_bytes(tm):
        return (2 * 4 * tm * Cp * 2       # x blocks, bf16, double-buffered
                + 2 * tm * Cop * 4        # out blocks, f32, double-buffered
                + 2 * Cp * Cop * 2        # weight, bf16, double-buffered
                + 2 * 2 * Cp * 4)         # scale/shift, f32, double-buffered

    # Budget against the smallest VMEM (v7x: 64 MiB physical) with headroom.
    while TM > 64 and _buf_bytes(TM) > 40 * 1024 * 1024:
        TM //= 2
    # Guarantee >= 2 grid steps so both v7x TensorCores get work.
    while TM > 64 and (M + TM - 1) // TM < 2:
        TM //= 2

    pad_m = (-M) % TM
    if pad_m:
        # Padded rows evaluate relu(shift) (not necessarily 0) but are sliced
        # off below -- keep that slice.
        xq = jnp.pad(xq, ((0, 0), (0, pad_m), (0, 0)))
    Mp = M + pad_m
    grid = (Mp // TM,)

    out_flat = pl.pallas_call(
        transition_kernel,
        out_shape=jax.ShapeDtypeStruct((Mp, Cop), jnp.float32),
        grid_spec=pltpu.PrefetchScalarGridSpec(
            num_scalar_prefetch=0,
            grid=grid,
            in_specs=[
                pl.BlockSpec((4, TM, Cp), lambda i: (0, i, 0)),
                pl.BlockSpec((1, Cp), lambda i: (0, 0)),
                pl.BlockSpec((1, Cp), lambda i: (0, 0)),
                pl.BlockSpec((Cp, Cop), lambda i: (0, 0)),
            ],
            out_specs=pl.BlockSpec((TM, Cop), lambda i: (i, 0)),
        ),
        compiler_params=pltpu.CompilerParams(
            dimension_semantics=("parallel",),
            # Safe on every generation (v7x physical VMEM is 64 MiB); our own
            # buffer budget above stays <= 40 MiB, leaving compiler headroom.
            vmem_limit_bytes=48 * 1024 * 1024,
        ),
    )(xq, scale, shift, w)

    # Slice off M padding and Cout lane padding, then back to NCHW.
    out = out_flat[:M, :Cout].reshape(N, Ho, Wo, Cout)
    return jnp.transpose(out, (0, 3, 1, 2))


def transition_reference(x_nchw, gamma, beta, running_mean, running_var,
                         conv_weight, eps=1e-5):
    """Pure-JAX f32 reference mirroring the PyTorch module (inference BN)."""
    inv = 1.0 / jnp.sqrt(running_var + eps)
    y = (x_nchw - running_mean[None, :, None, None]) * inv[None, :, None, None]
    y = y * gamma[None, :, None, None] + beta[None, :, None, None]
    y = jnp.maximum(y, 0.0)
    Cout, Cin = conv_weight.shape[0], conv_weight.shape[1]
    z = jnp.einsum('nchw,oc->nohw', y, conv_weight.reshape(Cout, Cin))
    N, Co, H, W = z.shape
    z = z.reshape(N, Co, H // 2, 2, W // 2, 2).mean(axis=(3, 5))
    return z


if __name__ == "__main__":
    # Small shapes consistent with the module: Transition(inplanes=8, outplanes=16)
    N, Cin, H, W = 2, 8, 16, 16
    Cout = 16

    key = jax.random.PRNGKey(0)
    kx, kg, kb, km, kv, kw = jax.random.split(key, 6)

    x = jax.random.normal(kx, (N, Cin, H, W), dtype=jnp.float32)

    # Deterministic synthetic parameters (shapes from the module's __init__).
    gamma = 1.0 + 0.1 * jax.random.normal(kg, (Cin,), dtype=jnp.float32)
    beta = 0.1 * jax.random.normal(kb, (Cin,), dtype=jnp.float32)
    running_mean = 0.1 * jax.random.normal(km, (Cin,), dtype=jnp.float32)
    running_var = jnp.abs(jax.random.normal(kv, (Cin,), dtype=jnp.float32)) + 0.5
    conv_weight = 0.1 * jax.random.normal(kw, (Cout, Cin, 1, 1), dtype=jnp.float32)

    out = transition_forward(x, gamma, beta, running_mean, running_var, conv_weight)
    out = jax.block_until_ready(out)

    ref = transition_reference(x, gamma, beta, running_mean, running_var, conv_weight)
    assert out.shape == (N, Cout, H // 2, W // 2), out.shape
    # Tolerance loosened vs. the f32 reference because activations/matmul are
    # streamed in bf16 (as called out in the perf review).
    assert jnp.allclose(out, ref, rtol=5e-2, atol=5e-2), \
        float(jnp.max(jnp.abs(out - ref)))

    print("KERNEL_OK")
</pallas_src>

<mosaic_0001>
module attributes {stable_mosaic.version = 11 : i64} {
  func.func @transition_kernel(%arg0: i32, %arg1: memref<4x64x128xbf16, #tpu.memory_space<vmem>>, %arg2: memref<1x128xf32, #tpu.memory_space<vmem>>, %arg3: memref<1x128xf32, #tpu.memory_space<vmem>>, %arg4: memref<128x128xbf16, #tpu.memory_space<vmem>>, %arg5: memref<64x128xf32, #tpu.memory_space<vmem>>) attributes {dimension_semantics = [#tpu.dimension_semantics<parallel>], iteration_bounds = array<i64: 2>, scalar_prefetch = 0 : i64, scratch_operands = 0 : i64, tpu.core_type = #tpu.core_type<tc>, window_params = [{transform_indices = @transform_0, window_bounds = array<i64: 4, 64, 128>}, {pipeline_mode = #tpu.pipeline_mode<synchronous>, transform_indices = @transform_1, window_bounds = array<i64: 1, 128>}, {pipeline_mode = #tpu.pipeline_mode<synchronous>, transform_indices = @transform_2, window_bounds = array<i64: 1, 128>}, {pipeline_mode = #tpu.pipeline_mode<synchronous>, transform_indices = @transform_3, window_bounds = array<i64: 128, 128>}, {transform_indices = @transform_4, window_bounds = array<i64: 64, 128>}]} {
    %c0 = arith.constant 0 : index
    %c0_0 = arith.constant 0 : index
    %0 = vector.load %arg2[%c0, %c0_0] : memref<1x128xf32, #tpu.memory_space<vmem>>, vector<1x128xf32>
    %1 = vector.shape_cast %0 : vector<1x128xf32> to vector<1x128xf32>
    %2 = vector.broadcast %1 : vector<1x128xf32> to vector<64x128xf32>
    %c0_1 = arith.constant 0 : index
    %c0_2 = arith.constant 0 : index
    %3 = vector.load %arg3[%c0_1, %c0_2] : memref<1x128xf32, #tpu.memory_space<vmem>>, vector<1x128xf32>
    %4 = vector.shape_cast %3 : vector<1x128xf32> to vector<1x128xf32>
    %5 = vector.broadcast %4 : vector<1x128xf32> to vector<64x128xf32>
    %cst = arith.constant 0.000000e+00 : f32
    %6 = vector.broadcast %cst : f32 to vector<64x128xf32>
    %c0_3 = arith.constant 0 : index
    %c0_4 = arith.constant 0 : index
    %c0_5 = arith.constant 0 : index
    %7 = vector.load %arg1[%c0_3, %c0_4, %c0_5] : memref<4x64x128xbf16, #tpu.memory_space<vmem>>, vector<1x64x128xbf16>
    %8 = vector.shape_cast %7 : vector<1x64x128xbf16> to vector<64x128xbf16>
    %9 = arith.extf %8 : vector<64x128xbf16> to vector<64x128xf32>
    %10 = arith.mulf %9, %2 : vector<64x128xf32>
    %11 = arith.addf %10, %5 : vector<64x128xf32>
    %cst_6 = arith.constant 0.000000e+00 : f32
    %12 = vector.broadcast %cst_6 : f32 to vector<64x128xf32>
    %13 = arith.maximumf %11, %12 : vector<64x128xf32>
    %14 = arith.addf %6, %13 : vector<64x128xf32>
    %c1 = arith.constant 1 : index
    %c0_7 = arith.constant 0 : index
    %c0_8 = arith.constant 0 : index
    %15 = vector.load %arg1[%c1, %c0_7, %c0_8] : memref<4x64x128xbf16, #tpu.memory_space<vmem>>, vector<1x64x128xbf16>
    %16 = vector.shape_cast %15 : vector<1x64x128xbf16> to vector<64x128xbf16>
    %17 = arith.extf %16 : vector<64x128xbf16> to vector<64x128xf32>
    %18 = arith.mulf %17, %2 : vector<64x128xf32>
    %19 = arith.addf %18, %5 : vector<64x128xf32>
    %cst_9 = arith.constant 0.000000e+00 : f32
    %20 = vector.broadcast %cst_9 : f32 to vector<64x128xf32>
    %21 = arith.maximumf %19, %20 : vector<64x128xf32>
    %22 = arith.addf %14, %21 : vector<64x128xf32>
    %c2 = arith.constant 2 : index
    %c0_10 = arith.constant 0 : index
    %c0_11 = arith.constant 0 : index
    %23 = vector.load %arg1[%c2, %c0_10, %c0_11] : memref<4x64x128xbf16, #tpu.memory_space<vmem>>, vector<1x64x128xbf16>
    %24 = vector.shape_cast %23 : vector<1x64x128xbf16> to vector<64x128xbf16>
    %25 = arith.extf %24 : vector<64x128xbf16> to vector<64x128xf32>
    %26 = arith.mulf %25, %2 : vector<64x128xf32>
    %27 = arith.addf %26, %5 : vector<64x128xf32>
    %cst_12 = arith.constant 0.000000e+00 : f32
    %28 = vector.broadcast %cst_12 : f32 to vector<64x128xf32>
    %29 = arith.maximumf %27, %28 : vector<64x128xf32>
    %30 = arith.addf %22, %29 : vector<64x128xf32>
    %c3 = arith.constant 3 : index
    %c0_13 = arith.constant 0 : index
    %c0_14 = arith.constant 0 : index
    %31 = vector.load %arg1[%c3, %c0_13, %c0_14] : memref<4x64x128xbf16, #tpu.memory_space<vmem>>, vector<1x64x128xbf16>
    %32 = vector.shape_cast %31 : vector<1x64x128xbf16> to vector<64x128xbf16>
    %33 = arith.extf %32 : vector<64x128xbf16> to vector<64x128xf32>
    %34 = arith.mulf %33, %2 : vector<64x128xf32>
    %35 = arith.addf %34, %5 : vector<64x128xf32>
    %cst_15 = arith.constant 0.000000e+00 : f32
    %36 = vector.broadcast %cst_15 : f32 to vector<64x128xf32>
    %37 = arith.maximumf %35, %36 : vector<64x128xf32>
    %38 = arith.addf %30, %37 : vector<64x128xf32>
    %39 = arith.truncf %38 : vector<64x128xf32> to vector<64x128xbf16>
    %c0_16 = arith.constant 0 : index
    %c0_17 = arith.constant 0 : index
    %40 = vector.load %arg4[%c0_16, %c0_17] : memref<128x128xbf16, #tpu.memory_space<vmem>>, vector<128x128xbf16>
    %cst_18 = arith.constant dense<0.000000e+00> : vector<64x128xf32>
    %41 = tpu.matmul %39, %40, %cst_18 {dimension_numbers = #tpu.dot_dimension_numbers<[1], [0], [0], [1], [0, 0, 1, 1], [], []>} : vector<64x128xbf16>, vector<128x128xbf16>, vector<64x128xf32> -> vector<64x128xf32>
    %c0_19 = arith.constant 0 : index
    %c0_20 = arith.constant 0 : index
    %42 = vector.load %arg5[%c0_19, %c0_20] : memref<64x128xf32, #tpu.memory_space<vmem>>, vector<64x128xf32>
    tpu.vector_store %arg5[%c0_19, %c0_20], %41 {strides = array<i32>} : memref<64x128xf32, #tpu.memory_space<vmem>>, vector<64x128xf32>,
    return
  }
  func.func @transform_0(%arg0: i32) -> (i32, i32, i32) {
    %c0_i32 = arith.constant 0 : i32
    %c0_i32_0 = arith.constant 0 : i32
    %c0_i32_1 = arith.constant 0 : i32
    return %c0_i32, %arg0, %c0_i32_0 : i32, i32, i32
  }
  func.func @transform_1(%arg0: i32) -> (i32, i32) {
    %c0_i32 = arith.constant 0 : i32
    %c0_i32_0 = arith.constant 0 : i32
    %c0_i32_1 = arith.constant 0 : i32
    return %c0_i32, %c0_i32_0 : i32, i32
  }
  func.func @transform_2(%arg0: i32) -> (i32, i32) {
    %c0_i32 = arith.constant 0 : i32
    %c0_i32_0 = arith.constant 0 : i32
    %c0_i32_1 = arith.constant 0 : i32
    return %c0_i32, %c0_i32_0 : i32, i32
  }
  func.func @transform_3(%arg0: i32) -> (i32, i32) {
    %c0_i32 = arith.constant 0 : i32
    %c0_i32_0 = arith.constant 0 : i32
    %c0_i32_1 = arith.constant 0 : i32
    return %c0_i32, %c0_i32_0 : i32, i32
  }
  func.func @transform_4(%arg0: i32) -> (i32, i32) {
    %c0_i32 = arith.constant 0 : i32
    %c0_i32_0 = arith.constant 0 : i32
    return %arg0, %c0_i32 : i32, i32
  }
}

</mosaic_0001>

<llo_original>
// kernel: tpu_custom_call.1
$region0: #{tpu_custom_call.1}
  #allocation0 [shape = 'u32[]', space=smem, size = 0x4, offset = 0x4, fixed_abs, tag = 'smem constant byte address 0x4 - core index']
  #allocation1 [shape = 'u32[144,128]{1,0:T(1,128)}', space=vmem, size = 0x12000, scoped, tag = 'internal scratch']
  #allocation8 [shape = 's32[]', space=sflag, size = 0x4, offset = 0, fixed_abs, tag = 'sflag constant byte address 0x0 - dummy sync flag']
  %s0 = inlined_call_operand.hbm [shape: bf16[4,128,128], index: 0, kind: input, shape index: {}]
  %s1 = inlined_call_operand.vmem [shape: f32[1,128], index: 1, kind: input, shape index: {}]
  %s2 = inlined_call_operand.vmem [shape: f32[1,128], index: 2, kind: input, shape index: {}]
  %s3 = inlined_call_operand.hbm [shape: bf16[128,128], index: 3, kind: input, shape index: {}]
  %s4 = inlined_call_operand.hbm [shape: f32[128,128], index: 4, kind: output, shape index: {}]
  %s5 = sld [smem:[#allocation0]]
  $region57: #{tpu_custom_call.1} parent=0
    _
  %s7 = ssub.s32 1, %s5
  %s8 = scalar_select 0, %s7, %s5
  $region1: #{tpu_custom_call.1} parent=0
    #allocation2 [shape = 'u8[131072]{0}', space=vmem, size = 0x20000, scoped, tag = 'input window, operand 0']
    #allocation3 [shape = 's32[2]{0}', space=sflag, size = 0x8, scoped, tag = 'scoped memory for tpu_custom_call.1']
    #allocation4 [shape = 's32[2]{0}', space=sflag, size = 0x8, scoped, tag = 'scoped memory for tpu_custom_call.1']
    #allocation5 [shape = 'u8[32768]{0}', space=vmem, size = 0x8000, scoped, tag = 'input window, operand 3, single buffered']
    #allocation6 [shape = 's32[1]{0}', space=sflag, size = 0x4, scoped, tag = 'scoped memory for tpu_custom_call.1']
    #allocation7 [shape = 'u8[65536]{0}', space=vmem, size = 0x10000, scoped, tag = 'output window, operand 0']
    %9 = vsyncpa [#allocation3], 0
    %s10 = scalar_lea.sflag [#allocation3], 1
    %11 = vsyncpa %s10, 0
    %12 = vsyncpa [#allocation6], 0
    %13 = vsyncpa [#allocation4], 0
    %s14 = scalar_lea.sflag [#allocation4], 1
    %15 = vsyncpa %s14, 0
    loop: start=0, step=1, limit=4
    $region2: #{tpu_custom_call.1} parent=1 // loop_pre_header
      _
    $region3: #{tpu_custom_call.1} parent=1 // loop_header
      %s17 = sphi 0, %s21
      %p18 = scmp.ge.s32.totalorder %s17, 4
      %s27 = sphi 0, %s29
      %s30 = sphi 0, %s27
      %s31 = sphi 0, %s30
      %s47 = sphi 0, %s31
      %s51 = sphi 0, %s51
      %s53 = sphi 0, %s51
      %s54 = sphi 0, %s53
      %s68 = sphi 0, %s54
      %s72 = sphi 0, %s72
      %s74 = sphi 0, %s72
      %s75 = sphi 0, %s74
      %s89 = sphi 0, %s75
      %s93 = sphi 0, %s93
      %s95 = sphi 0, %s93
      %s96 = sphi 0, %s95
      %s110 = sphi 0, %s96
      %s116 = sphi 0, %s118
      %s119 = sphi 0, %s116
      %s120 = sphi 0, %s119
      %s136 = sphi 0, %s120
    $region4: #{tpu_custom_call.1} parent=1 // loop_header_branch
      %20 = sbr.rel (%p18) target = $region8
    $region5: #{tpu_custom_call.1} parent=1 // loop_body
      %s22 = ssub.s32 %s17, 1
      %s23 = ssub.s32 %s17, 2
      %s24 = sadd.s32 %s17, 1
      %s25 = ssub.s32 %s17, %s24
      %p26 = scmp.eq.s32.totalorder %s25, 0
      %s28 = sadd.s32 %s27, 1
      %s29 = scalar_select %p26, %s27, %s28
      %p32 = pneg %p26
      %p33 = scmp.eq.s32.totalorder %s17, 1
      %p34 = por %p32, %p33
      %p35 = scmp.ne.s32.totalorder %s27, %s30
      %p36 = scmp.eq.s32.totalorder %s17, 0
      %p37 = por %p35, %p36
      %p38 = scmp.ne.s32.totalorder %s27, %s30
      %p39 = scmp.eq.s32.totalorder %s22, 1
      %p40 = por %p38, %p39
      %p41 = scmp.ne.s32.totalorder %s30, %s31
      %p42 = scmp.eq.s32.totalorder %s22, 0
      %p43 = por %p41, %p42
      %p44 = scmp.ne.s32.totalorder %s30, %s31
      %p45 = scmp.eq.s32.totalorder %s23, 1
      %p46 = por %p44, %p45
      %p48 = scmp.ne.s32.totalorder %s31, %s47
      %p49 = scmp.eq.s32.totalorder %s23, 0
      %p50 = por %p48, %p49
      %s52 = sadd.s32 %s51, 1
      %p55 = scmp.eq.s32.totalorder %s17, 1
      %p56 = scmp.ne.s32.totalorder %s51, %s53
      %p57 = scmp.eq.s32.totalorder %s17, 0
      %p58 = por %p56, %p57
      %p59 = scmp.ne.s32.totalorder %s51, %s53
      %p60 = scmp.eq.s32.totalorder %s22, 1
      %p61 = por %p59, %p60
      %p62 = scmp.ne.s32.totalorder %s53, %s54
      %p63 = scmp.eq.s32.totalorder %s22, 0
      %p64 = por %p62, %p63
      %p65 = scmp.ne.s32.totalorder %s53, %s54
      %p66 = scmp.eq.s32.totalorder %s23, 1
      %p67 = por %p65, %p66
      %p69 = scmp.ne.s32.totalorder %s54, %s68
      %p70 = scmp.eq.s32.totalorder %s23, 0
      %p71 = por %p69, %p70
      %s73 = sadd.s32 %s72, 1
      %p76 = scmp.eq.s32.totalorder %s17, 1
      %p77 = scmp.ne.s32.totalorder %s72, %s74
      %p78 = scmp.eq.s32.totalorder %s17, 0
      %p79 = por %p77, %p78
      %p80 = scmp.ne.s32.totalorder %s72, %s74
      %p81 = scmp.eq.s32.totalorder %s22, 1
      %p82 = por %p80, %p81
      %p83 = scmp.ne.s32.totalorder %s74, %s75
      %p84 = scmp.eq.s32.totalorder %s22, 0
      %p85 = por %p83, %p84
      %p86 = scmp.ne.s32.totalorder %s74, %s75
      %p87 = scmp.eq.s32.totalorder %s23, 1
      %p88 = por %p86, %p87
      %p90 = scmp.ne.s32.totalorder %s75, %s89
      %p91 = scmp.eq.s32.totalorder %s23, 0
      %p92 = por %p90, %p91
      %s94 = sadd.s32 %s93, 1
      %p97 = scmp.eq.s32.totalorder %s17, 1
      %p98 = scmp.ne.s32.totalorder %s93, %s95
      %p99 = scmp.eq.s32.totalorder %s17, 0
      %p100 = por %p98, %p99
      %p101 = scmp.ne.s32.totalorder %s93, %s95
      %p102 = scmp.eq.s32.totalorder %s22, 1
      %p103 = por %p101, %p102
      %p104 = scmp.ne.s32.totalorder %s95, %s96
      %p105 = scmp.eq.s32.totalorder %s22, 0
      %p106 = por %p104, %p105
      %p107 = scmp.ne.s32.totalorder %s95, %s96
      %p108 = scmp.eq.s32.totalorder %s23, 1
      %p109 = por %p107, %p108
      %p111 = scmp.ne.s32.totalorder %s96, %s110
      %p112 = scmp.eq.s32.totalorder %s23, 0
      %p113 = por %p111, %p112
      %s114 = ssub.s32 %s17, %s24
      %p115 = scmp.eq.s32.totalorder %s114, 0
      %s117 = sadd.s32 %s116, 1
      %s118 = scalar_select %p115, %s116, %s117
      %p121 = pneg %p115
      %p122 = scmp.eq.s32.totalorder %s17, 1
      %p123 = por %p121, %p122
      %p124 = scmp.ne.s32.totalorder %s116, %s119
      %p125 = scmp.eq.s32.totalorder %s17, 0
      %p126 = por %p124, %p125
      %p127 = scmp.ne.s32.totalorder %s116, %s119
      %p128 = scmp.eq.s32.totalorder %s22, 1
      %p129 = por %p127, %p128
      %p130 = scmp.ne.s32.totalorder %s119, %s120
      %p131 = scmp.eq.s32.totalorder %s22, 0
      %p132 = por %p130, %p131
      %p133 = scmp.ne.s32.totalorder %s119, %s120
      %p134 = scmp.eq.s32.totalorder %s23, 1
      %p135 = por %p133, %p134
      %p137 = scmp.ne.s32.totalorder %s120, %s136
      %p138 = scmp.eq.s32.totalorder %s23, 0
      %p139 = por %p137, %p138
      %p140 = scmp.le.s32.totalorder 1, %s17
      %p141 = scmp.lt.s32.totalorder %s17, 3
      %p142 = pnand %p140, %p141
      %p143 = pneg %p142
      // Predicated region
      $region9: #{tpu_custom_call.1} parent=5 // pred_check
        _
      $region10: #{tpu_custom_call.1} parent=5 // pred_check_branch
        %145 = sbr.rel (%p142) target = $region12
      $region11: #{tpu_custom_call.1} parent=5 // pred_region
        %s146 = ssub.s32 %s17, 1
        // Predicated region
        $region13: #{tpu_custom_call.1} parent=11 // pred_check
          %p147 = pneg %p64
        $region14: #{tpu_custom_call.1} parent=11 // pred_check_branch
          %149 = sbr.rel (%p147) target = $region16
        $region15: #{tpu_custom_call.1} parent=11 // pred_region
          _
        $region16: #{tpu_custom_call.1} parent=11 // pred_fallthru
          _
        // Predicated region
        $region17: #{tpu_custom_call.1} parent=11 // pred_check
          %p150 = pneg %p85
        $region18: #{tpu_custom_call.1} parent=11 // pred_check_branch
          %152 = sbr.rel (%p150) target = $region20
        $region19: #{tpu_custom_call.1} parent=11 // pred_region
          _
        $region20: #{tpu_custom_call.1} parent=11 // pred_fallthru
          _
        // Predicated region
        $region21: #{tpu_custom_call.1} parent=11 // pred_check
          %p153 = pneg %p106
        $region22: #{tpu_custom_call.1} parent=11 // pred_check_branch
          %155 = sbr.rel (%p153) target = $region24
        $region23: #{tpu_custom_call.1} parent=11 // pred_region
          %s157 = ssub.s32 1024, 1024
          %158 = vsyncadd [#allocation6], %s157
          %s159 = sshll.u32 [#allocation5], 4
          %s160 = int_to_ptr.vmem [resolvable:$true] %s159
          %165 = dma.hbm_to_vmem [thread:$0]  %s3, 1024, %s160, [#allocation6], 64, 64, 4
        $region24: #{tpu_custom_call.1} parent=11 // pred_fallthru
          _
      $region12: #{tpu_custom_call.1} parent=5 // pred_fallthru
        _
      %p166 = scmp.lt.s32.totalorder %s17, 2
      // Predicated region
      $region25: #{tpu_custom_call.1} parent=5 // pred_check
        %p167 = pneg %p166
      $region26: #{tpu_custom_call.1} parent=5 // pred_check_branch
        %169 = sbr.rel (%p167) target = $region28
      $region27: #{tpu_custom_call.1} parent=5 // pred_region
        // Predicated region
        $region29: #{tpu_custom_call.1} parent=27 // pred_check
          %p170 = pneg %p37
        $region30: #{tpu_custom_call.1} parent=27 // pred_check_branch
          %172 = sbr.rel (%p170) target = $region32
        $region31: #{tpu_custom_call.1} parent=27 // pred_region
          #allocation9 [shape = 'u32[6]{0}', space=smem, size = 0x18, scoped, tag = 'DMA stride descriptor']
          %s173 = sand.u32 %s27, 1
          %s174 = scalar_lea.sflag [#allocation3], %s173
          %s175 = sand.u32 %s27, 1
          %s176 = smul.addr %s175, 128
          %s177 = scalar_lea.vmem [#allocation2], %s176
          %s178 = smul.u32 8, %s17
          %s180 = ssub.s32 2048, 2048
          %181 = vsyncadd %s174, %s180
          %s182 = smul.addr %s178, 64
          %s183 = scalar_lea.hbm %s0, %s182
          %s185 = sshll.u32 1, 14
          %s186 = sxor.u32 4294967295, %s185
          %s188 = sld [smem:[#allocation0]]
          %s189 = sadd.s32 2, %s188
          %s191 = sshll.u32 7, 26
          %s192 = sxor.u32 4294967295, %s191
          %s193 = sand.u32 0, %s192
          %s194 = sshll.u32 %s189, 26
          %s195 = sor.u32 %s193, %s194
          %s196 = sshll.u32 %s177, 4
          %s197 = int_to_ptr.vmem [resolvable:$true] %s196
          %203 = sst [smem:[#allocation9]] 1024
          %s204 = scalar_lea.smem [#allocation9], 1
          %205 = sst [smem:[%s204]] 512
          %s206 = scalar_lea.smem [#allocation9], 2
          %207 = sst [smem:[%s206]] 8
          %s208 = scalar_lea.smem [#allocation9], 3
          %209 = sst [smem:[%s208]] 64
          %s210 = scalar_lea.smem [#allocation9], 4
          %211 = sst [smem:[%s210]] 64
          %s212 = scalar_lea.smem [#allocation9], 5
          %213 = sst [smem:[%s212]] 4
          %215 = dma.general %s183, 2048, %s197, %s174, [#allocation8], [#allocation9], %s195, 0
        $region32: #{tpu_custom_call.1} parent=27 // pred_fallthru
          _
      $region28: #{tpu_custom_call.1} parent=5 // pred_fallthru
        _
      %p216 = scmp.le.s32.totalorder 1, %s17
      %p217 = scmp.lt.s32.totalorder %s17, 3
      %p218 = pnand %p216, %p217
      %p219 = pneg %p218
      // Predicated region
      $region33: #{tpu_custom_call.1} parent=5 // pred_check
        _
      $region34: #{tpu_custom_call.1} parent=5 // pred_check_branch
        %221 = sbr.rel (%p218) target = $region36
      $region35: #{tpu_custom_call.1} parent=5 // pred_region
        %s222 = ssub.s32 %s17, 1
        %s223 = sand.u32 %s30, 1
        %s224 = scalar_lea.sflag [#allocation3], %s223
        %s225 = sand.u32 %s30, 1
        %s226 = smul.addr %s225, 128
        %s227 = scalar_lea.vmem [#allocation2], %s226
        // Predicated region
        $region37: #{tpu_custom_call.1} parent=35 // pred_check
          %p228 = pneg %p43
        $region38: #{tpu_custom_call.1} parent=35 // pred_check_branch
          %230 = sbr.rel (%p228) target = $region40
        $region39: #{tpu_custom_call.1} parent=35 // pred_region
          %231 = dma.done %s224, 2048
        $region40: #{tpu_custom_call.1} parent=35 // pred_fallthru
          _
        // Predicated region
        $region41: #{tpu_custom_call.1} parent=35 // pred_check
          %p232 = pneg %p106
        $region42: #{tpu_custom_call.1} parent=35 // pred_check_branch
          %234 = sbr.rel (%p232) target = $region44
        $region43: #{tpu_custom_call.1} parent=35 // pred_region
          %235 = dma.done [#allocation6], 1024
        $region44: #{tpu_custom_call.1} parent=35 // pred_fallthru
          _
        %s236 = sand.u32 %s30, 1
        %s237 = scalar_lea.sflag [#allocation3], %s236
        %s238 = sand.u32 %s30, 1
        %s239 = smul.addr %s238, 128
        %s240 = scalar_lea.vmem [#allocation2], %s239
        %p241 = pneg %p43
        %p242 = pneg %p40
        %p243 = pneg %p64
        %p244 = pneg %p61
        %p245 = pneg %p85
        %p246 = pneg %p82
        %p247 = pneg %p106
        %p248 = pneg %p103
        %p249 = pneg %p132
        %p250 = pneg %p129
        %s251 = sand.u32 %s119, 1
        %s252 = scalar_lea.sflag [#allocation4], %s251
        %s253 = sand.u32 %s119, 1
        %s254 = smul.addr %s253, 64
        %s255 = scalar_lea.vmem [#allocation7], %s254
        %s256 = smul.u32 8, %s22
        %s257 = smul.u32 8, %s22
        %v259 = vld [vmem:[%s1] sm:$0x1]
        %v261 = vlaneseq
        %v262 = vshrl.u32 %v261, 7
        %v263 = vsub.s32 0, %v262
        %v264 = vrot.slane %v259, %v263
        %v266 = vld [vmem:[%s2] sm:$0x1]
        %v268 = vlaneseq
        %v269 = vshrl.u32 %v268, 7
        %v270 = vsub.s32 0, %v269
        %v271 = vrot.slane %v266, %v270
        %v273 = vld [vmem:[%s227] sm:$0xf]
        %v274 = vld [vmem:[%s227 + $0x4] sm:$0xf]
        %v275 = vld [vmem:[%s227 + $0x8] sm:$0xf]
        %v276 = vld [vmem:[%s227 + $0xc] sm:$0xf]
        %v277 = vld [vmem:[%s227 + $0x10] sm:$0xf]
        %v278 = vld [vmem:[%s227 + $0x14] sm:$0xf]
        %v279 = vld [vmem:[%s227 + $0x18] sm:$0xf]
        %v280 = vld [vmem:[%s227 + $0x1c] sm:$0xf]
        %v281 = vunpack.c.l.bf16 %v273
        %v282 = vunpack.c.l.bf16 %v274
        %v283 = vunpack.c.l.bf16 %v275
        %v284 = vunpack.c.l.bf16 %v276
        %v285 = vunpack.c.l.bf16 %v277
        %v286 = vunpack.c.l.bf16 %v278
        %v287 = vunpack.c.l.bf16 %v279
        %v288 = vunpack.c.l.bf16 %v280
        %v289 = vmul.f32 %v281, %v264
        %v290 = vmul.f32 %v282, %v264
        %v291 = vmul.f32 %v283, %v264
        %v292 = vmul.f32 %v284, %v264
        %v293 = vmul.f32 %v285, %v264
        %v294 = vmul.f32 %v286, %v264
        %v295 = vmul.f32 %v287, %v264
        %v296 = vmul.f32 %v288, %v264
        %v297 = vadd.f32 %v289, %v271
        %v298 = vadd.f32 %v290, %v271
        %v299 = vadd.f32 %v291, %v271
        %v300 = vadd.f32 %v292, %v271
        %v301 = vadd.f32 %v293, %v271
        %v302 = vadd.f32 %v294, %v271
        %v303 = vadd.f32 %v295, %v271
        %v304 = vadd.f32 %v296, %v271
        %v305 = vmax.f32 %v297, 0.0
        %v306 = vmax.f32 %v298, 0.0
        %v307 = vmax.f32 %v299, 0.0
        %v308 = vmax.f32 %v300, 0.0
        %v309 = vmax.f32 %v301, 0.0
        %v310 = vmax.f32 %v302, 0.0
        %v311 = vmax.f32 %v303, 0.0
        %v312 = vmax.f32 %v304, 0.0
        %v313 = vadd.f32 %v305, 0.0
        %v314 = vadd.f32 %v306, 0.0
        %v315 = vadd.f32 %v307, 0.0
        %v316 = vadd.f32 %v308, 0.0
        %v317 = vadd.f32 %v309, 0.0
        %v318 = vadd.f32 %v310, 0.0
        %v319 = vadd.f32 %v311, 0.0
        %v320 = vadd.f32 %v312, 0.0
        %s321 = scalar_lea.vmem %s227, 32 [#allocation2]
        %v322 = vld [vmem:[%s321] sm:$0xf]
        %v323 = vld [vmem:[%s321 + $0x4] sm:$0xf]
        %v324 = vld [vmem:[%s321 + $0x8] sm:$0xf]
        %v325 = vld [vmem:[%s321 + $0xc] sm:$0xf]
        %v326 = vld [vmem:[%s321 + $0x10] sm:$0xf]
        %v327 = vld [vmem:[%s321 + $0x14] sm:$0xf]
        %v328 = vld [vmem:[%s321 + $0x18] sm:$0xf]
        %v329 = vld [vmem:[%s321 + $0x1c] sm:$0xf]
        %v330 = vunpack.c.l.bf16 %v322
        %v331 = vunpack.c.l.bf16 %v323
        %v332 = vunpack.c.l.bf16 %v324
        %v333 = vunpack.c.l.bf16 %v325
        %v334 = vunpack.c.l.bf16 %v326
        %v335 = vunpack.c.l.bf16 %v327
        %v336 = vunpack.c.l.bf16 %v328
        %v337 = vunpack.c.l.bf16 %v329
        %v338 = vmul.f32 %v330, %v264
        %v339 = vmul.f32 %v331, %v264
        %v340 = vmul.f32 %v332, %v264
        %v341 = vmul.f32 %v333, %v264
        %v342 = vmul.f32 %v334, %v264
        %v343 = vmul.f32 %v335, %v264
        %v344 = vmul.f32 %v336, %v264
        %v345 = vmul.f32 %v337, %v264
        %v346 = vadd.f32 %v338, %v271
        %v347 = vadd.f32 %v339, %v271
        %v348 = vadd.f32 %v340, %v271
        %v349 = vadd.f32 %v341, %v271
        %v350 = vadd.f32 %v342, %v271
        %v351 = vadd.f32 %v343, %v271
        %v352 = vadd.f32 %v344, %v271
        %v353 = vadd.f32 %v345, %v271
        %v354 = vmax.f32 %v346, 0.0
        %v355 = vmax.f32 %v347, 0.0
        %v356 = vmax.f32 %v348, 0.0
        %v357 = vmax.f32 %v349, 0.0
        %v358 = vmax.f32 %v350, 0.0
        %v359 = vmax.f32 %v351, 0.0
        %v360 = vmax.f32 %v352, 0.0
        %v361 = vmax.f32 %v353, 0.0
        %v362 = vadd.f32 %v313, %v354
        %v363 = vadd.f32 %v314, %v355
        %v364 = vadd.f32 %v315, %v356
        %v365 = vadd.f32 %v316, %v357
        %v366 = vadd.f32 %v317, %v358
        %v367 = vadd.f32 %v318, %v359
        %v368 = vadd.f32 %v319, %v360
        %v369 = vadd.f32 %v320, %v361
        %s370 = scalar_lea.vmem %s227, 64 [#allocation2]
        %v371 = vld [vmem:[%s370] sm:$0xf]
        %v372 = vld [vmem:[%s370 + $0x4] sm:$0xf]
        %v373 = vld [vmem:[%s370 + $0x8] sm:$0xf]
        %v374 = vld [vmem:[%s370 + $0xc] sm:$0xf]
        %v375 = vld [vmem:[%s370 + $0x10] sm:$0xf]
        %v376 = vld [vmem:[%s370 + $0x14] sm:$0xf]
        %v377 = vld [vmem:[%s370 + $0x18] sm:$0xf]
        %v378 = vld [vmem:[%s370 + $0x1c] sm:$0xf]
        %v379 = vunpack.c.l.bf16 %v371
        %v380 = vunpack.c.l.bf16 %v372
        %v381 = vunpack.c.l.bf16 %v373
        %v382 = vunpack.c.l.bf16 %v374
        %v383 = vunpack.c.l.bf16 %v375
        %v384 = vunpack.c.l.bf16 %v376
        %v385 = vunpack.c.l.bf16 %v377
        %v386 = vunpack.c.l.bf16 %v378
        %v387 = vmul.f32 %v379, %v264
        %v388 = vmul.f32 %v380, %v264
        %v389 = vmul.f32 %v381, %v264
        %v390 = vmul.f32 %v382, %v264
        %v391 = vmul.f32 %v383, %v264
        %v392 = vmul.f32 %v384, %v264
        %v393 = vmul.f32 %v385, %v264
        %v394 = vmul.f32 %v386, %v264
        %v395 = vadd.f32 %v387, %v271
        %v396 = vadd.f32 %v388, %v271
        %v397 = vadd.f32 %v389, %v271
        %v398 = vadd.f32 %v390, %v271
        %v399 = vadd.f32 %v391, %v271
        %v400 = vadd.f32 %v392, %v271
        %v401 = vadd.f32 %v393, %v271
        %v402 = vadd.f32 %v394, %v271
        %v403 = vmax.f32 %v395, 0.0
        %v404 = vmax.f32 %v396, 0.0
        %v405 = vmax.f32 %v397, 0.0
        %v406 = vmax.f32 %v398, 0.0
        %v407 = vmax.f32 %v399, 0.0
        %v408 = vmax.f32 %v400, 0.0
        %v409 = vmax.f32 %v401, 0.0
        %v410 = vmax.f32 %v402, 0.0
        %v411 = vadd.f32 %v362, %v403
        %v412 = vadd.f32 %v363, %v404
        %v413 = vadd.f32 %v364, %v405
        %v414 = vadd.f32 %v365, %v406
        %v415 = vadd.f32 %v366, %v407
        %v416 = vadd.f32 %v367, %v408
        %v417 = vadd.f32 %v368, %v409
        %v418 = vadd.f32 %v369, %v410
        %s419 = scalar_lea.vmem %s227, 96 [#allocation2]
        %v420 = vld [vmem:[%s419] sm:$0xf]
        %v421 = vld [vmem:[%s419 + $0x4] sm:$0xf]
        %v422 = vld [vmem:[%s419 + $0x8] sm:$0xf]
        %v423 = vld [vmem:[%s419 + $0xc] sm:$0xf]
        %v424 = vld [vmem:[%s419 + $0x10] sm:$0xf]
        %v425 = vld [vmem:[%s419 + $0x14] sm:$0xf]
        %v426 = vld [vmem:[%s419 + $0x18] sm:$0xf]
        %v427 = vld [vmem:[%s419 + $0x1c] sm:$0xf]
        %v428 = vunpack.c.l.bf16 %v420
        %v429 = vunpack.c.l.bf16 %v421
        %v430 = vunpack.c.l.bf16 %v422
        %v431 = vunpack.c.l.bf16 %v423
        %v432 = vunpack.c.l.bf16 %v424
        %v433 = vunpack.c.l.bf16 %v425
        %v434 = vunpack.c.l.bf16 %v426
        %v435 = vunpack.c.l.bf16 %v427
        %v436 = vmul.f32 %v428, %v264
        %v437 = vmul.f32 %v429, %v264
        %v438 = vmul.f32 %v430, %v264
        %v439 = vmul.f32 %v431, %v264
        %v440 = vmul.f32 %v432, %v264
        %v441 = vmul.f32 %v433, %v264
        %v442 = vmul.f32 %v434, %v264
        %v443 = vmul.f32 %v435, %v264
        %v444 = vadd.f32 %v436, %v271
        %v445 = vadd.f32 %v437, %v271
        %v446 = vadd.f32 %v438, %v271
        %v447 = vadd.f32 %v439, %v271
        %v448 = vadd.f32 %v440, %v271
        %v449 = vadd.f32 %v441, %v271
        %v450 = vadd.f32 %v442, %v271
        %v451 = vadd.f32 %v443, %v271
        %v452 = vmax.f32 %v444, 0.0
        %v453 = vmax.f32 %v445, 0.0
        %v454 = vmax.f32 %v446, 0.0
        %v455 = vmax.f32 %v447, 0.0
        %v456 = vmax.f32 %v448, 0.0
        %v457 = vmax.f32 %v449, 0.0
        %v458 = vmax.f32 %v450, 0.0
        %v459 = vmax.f32 %v451, 0.0
        %v460 = vadd.f32 %v411, %v452
        %v461 = vadd.f32 %v412, %v453
        %v462 = vadd.f32 %v413, %v454
        %v463 = vadd.f32 %v414, %v455
        %v464 = vadd.f32 %v415, %v456
        %v465 = vadd.f32 %v416, %v457
        %v466 = vadd.f32 %v417, %v458
        %v467 = vadd.f32 %v418, %v459
        %v468 = vpack.c.bf16 %v461, %v460
        %v469 = vpack.c.bf16 %v463, %v462
        %v470 = vpack.c.bf16 %v465, %v464
        %v471 = vpack.c.bf16 %v467, %v466
        %v472 = vld [vmem:[#allocation5] sm:$0xf]
        %v473 = vld [vmem:[#allocation5 + $0x4] sm:$0xf]
        %v474 = vld [vmem:[#allocation5 + $0x8] sm:$0xf]
        %v475 = vld [vmem:[#allocation5 + $0xc] sm:$0xf]
        %v476 = vld [vmem:[#allocation5 + $0x10] sm:$0xf]
        %v477 = vld [vmem:[#allocation5 + $0x14] sm:$0xf]
        %v478 = vld [vmem:[#allocation5 + $0x18] sm:$0xf]
        %v479 = vld [vmem:[#allocation5 + $0x1c] sm:$0xf]
        %v480 = vld [vmem:[#allocation5 + $0x20] sm:$0xf]
        %v481 = vld [vmem:[#allocation5 + $0x24] sm:$0xf]
        %v482 = vld [vmem:[#allocation5 + $0x28] sm:$0xf]
        %v483 = vld [vmem:[#allocation5 + $0x2c] sm:$0xf]
        %v484 = vld [vmem:[#allocation5 + $0x30] sm:$0xf]
        %v485 = vld [vmem:[#allocation5 + $0x34] sm:$0xf]
        %v486 = vld [vmem:[#allocation5 + $0x38] sm:$0xf]
        %v487 = vld [vmem:[#allocation5 + $0x3c] sm:$0xf]
        %v504 = vunpack.c.l.b16 %v472
        %v505 = vunpack.c.l.b16 %v473
        %v506 = vunpack.c.l.b16 %v474
        %v507 = vunpack.c.l.b16 %v475
        %v508 = vunpack.c.l.b16 %v476
        %v509 = vunpack.c.l.b16 %v477
        %v510 = vunpack.c.l.b16 %v478
        %v511 = vunpack.c.l.b16 %v479
        %v512 = vunpack.c.l.b16 %v480
        %v513 = vunpack.c.l.b16 %v481
        %v514 = vunpack.c.l.b16 %v482
        %v515 = vunpack.c.l.b16 %v483
        %v516 = vunpack.c.l.b16 %v484
        %v517 = vunpack.c.l.b16 %v485
        %v518 = vunpack.c.l.b16 %v486
        %v519 = vunpack.c.l.b16 %v487
        %v520 = vpack.c.b16 %v505, %v504
        %v521 = vpack.c.b16 %v507, %v506
        %v522 = vpack.c.b16 %v509, %v508
        %v523 = vpack.c.b16 %v511, %v510
        %v524 = vpack.c.b16 %v513, %v512
        %v525 = vpack.c.b16 %v515, %v514
        %v526 = vpack.c.b16 %v517, %v516
        %v527 = vpack.c.b16 %v519, %v518
        %536 = vmatprep.subr.bf16.mxu0 0
        %537 = vmatpush1.bf16.msra.mxu0 %v520
        %538 = vmatprep.subr.bf16.mxu0 0
        %539 = vmatpush1.bf16.msra.mxu0 %v521
        %540 = vmatprep.subr.bf16.mxu0 0
        %541 = vmatpush1.bf16.msra.mxu0 %v522
        %542 = vmatprep.subr.bf16.mxu0 0
        %543 = vmatpush1.bf16.msra.mxu0 %v523
        %544 = vmatprep.subr.bf16.mxu0 0
        %545 = vmatpush1.bf16.msra.mxu0 %v524
        %546 = vmatprep.subr.bf16.mxu0 0
        %547 = vmatpush1.bf16.msra.mxu0 %v525
        %548 = vmatprep.subr.bf16.mxu0 0
        %549 = vmatpush1.bf16.msra.mxu0 %v526
        %550 = vmatprep.subr.bf16.mxu0 0
        %551 = vmatpush1.bf16.msra.mxu0 %v527
        %552 = vmatprep.subr.bf16.mxu0 0
        %553 = vmatpush1.bf16.msra.mxu0 0
        %554 = vmatprep.subr.bf16.mxu0 0
        %555 = vmatpush1.bf16.msra.mxu0 0
        %556 = vmatprep.subr.bf16.mxu0 0
        %557 = vmatpush1.bf16.msra.mxu0 0
        %558 = vmatprep.subr.bf16.mxu0 0
        %559 = vmatpush1.bf16.msra.mxu0 0
        %560 = vmatprep.subr.bf16.mxu0 0
        %561 = vmatpush1.bf16.msra.mxu0 0
        %562 = vmatprep.subr.bf16.mxu0 0
        %563 = vmatpush1.bf16.msra.mxu0 0
        %564 = vmatprep.subr.bf16.mxu0 0
        %565 = vmatpush1.bf16.msra.mxu0 0
        %566 = vmatprep.subr.bf16.mxu0 0
        %567 = vmatpush1.bf16.msra.mxu0 0
        %568 = vmatprep.mubr.bf16.mxu0 0
        %569 = vmatmul.mubr.bf16.gmra.mrb[0].mxu0 %v468
        %v570 = vpop.f32.mrb[0].mxu0
        %v571 = vadd.f32 0.0, %v570
        %v572 = vpop.f32.mrb[0].mxu0
        %v573 = vpop.f32.mrb[0].mxu0
        %v574 = vadd.f32 0.0, %v573
        %v575 = vpop.f32.mrb[0].mxu0
        %576 = vmatprep.mubr.bf16.mxu0 0
        %577 = vmatmul.mubr.bf16.gmra.mrb[0].mxu0 %v469
        %v578 = vpop.f32.mrb[0].mxu0
        %v579 = vadd.f32 0.0, %v578
        %v580 = vpop.f32.mrb[0].mxu0
        %v581 = vpop.f32.mrb[0].mxu0
        %v582 = vadd.f32 0.0, %v581
        %v583 = vpop.f32.mrb[0].mxu0
        %584 = vmatprep.mubr.bf16.mxu0 0
        %585 = vmatmul.mubr.bf16.gmra.mrb[0].mxu0 %v470
        %v586 = vpop.f32.mrb[0].mxu0
        %v587 = vadd.f32 0.0, %v586
        %v588 = vpop.f32.mrb[0].mxu0
        %v589 = vpop.f32.mrb[0].mxu0
        %v590 = vadd.f32 0.0, %v589
        %v591 = vpop.f32.mrb[0].mxu0
        %592 = vmatprep.mubr.bf16.mxu0 0
        %593 = vmatmul.mubr.bf16.gmra.mrb[0].mxu0 %v471
        %v594 = vpop.f32.mrb[0].mxu0
        %v595 = vadd.f32 0.0, %v594
        %v596 = vpop.f32.mrb[0].mxu0
        %v597 = vpop.f32.mrb[0].mxu0
        %v598 = vadd.f32 0.0, %v597
        %v599 = vpop.f32.mrb[0].mxu0
        %600 = vdwg.mxu0
        %601 = vst [vmem:[%s255] sm:$0xff] %v571
        %602 = vst [vmem:[%s255 + $0x8] sm:$0xff] %v574
        %603 = vst [vmem:[%s255 + $0x10] sm:$0xff] %v579
        %604 = vst [vmem:[%s255 + $0x18] sm:$0xff] %v582
        %605 = vst [vmem:[%s255 + $0x20] sm:$0xff] %v587
        %606 = vst [vmem:[%s255 + $0x28] sm:$0xff] %v590
        %607 = vst [vmem:[%s255 + $0x30] sm:$0xff] %v595
        %608 = vst [vmem:[%s255 + $0x38] sm:$0xff] %v598
        %s609 = sand.u32 %s119, 1
        %s610 = scalar_lea.sflag [#allocation4], %s609
        %s611 = sand.u32 %s119, 1
        %s612 = smul.addr %s611, 64
        %s613 = scalar_lea.vmem [#allocation7], %s612
        // Predicated region
        $region45: #{tpu_custom_call.1} parent=35 // pred_check
          %p614 = pneg %p129
        $region46: #{tpu_custom_call.1} parent=35 // pred_check_branch
          %616 = sbr.rel (%p614) target = $region48
        $region47: #{tpu_custom_call.1} parent=35 // pred_region
          %s617 = smul.u32 8, %s22
          %s619 = ssub.s32 1024, 1024
          %620 = vsyncadd %s610, %s619
          %s621 = smul.addr %s617, 128
          %s622 = scalar_lea.hbm %s4, %s621
          %s623 = sshll.u32 %s613, 4
          %s624 = int_to_ptr.vmem [resolvable:$true] %s623
          %629 = dma.vmem_to_hbm [thread:$0]  %s624, 1024, %s622, %s610, 128, 128, 8
        $region48: #{tpu_custom_call.1} parent=35 // pred_fallthru
          _
      $region36: #{tpu_custom_call.1} parent=5 // pred_fallthru
        _
      %p630 = scmp.le.s32.totalorder 2, %s17
      // Predicated region
      $region49: #{tpu_custom_call.1} parent=5 // pred_check
        %p631 = pneg %p630
      $region50: #{tpu_custom_call.1} parent=5 // pred_check_branch
        %633 = sbr.rel (%p631) target = $region52
      $region51: #{tpu_custom_call.1} parent=5 // pred_region
        %s634 = ssub.s32 %s17, 2
        // Predicated region
        $region53: #{tpu_custom_call.1} parent=51 // pred_check
          %p635 = pneg %p135
        $region54: #{tpu_custom_call.1} parent=51 // pred_check_branch
          %637 = sbr.rel (%p635) target = $region56
        $region55: #{tpu_custom_call.1} parent=51 // pred_region
          %s638 = sand.u32 %s120, 1
          %s639 = scalar_lea.sflag [#allocation4], %s638
          %s640 = sand.u32 %s120, 1
          %s641 = smul.addr %s640, 64
          %s642 = scalar_lea.vmem [#allocation7], %s641
          %643 = dma.done %s639, 1024
        $region56: #{tpu_custom_call.1} parent=51 // pred_fallthru
          _
      $region52: #{tpu_custom_call.1} parent=5 // pred_fallthru
        _
    $region6: #{tpu_custom_call.1} parent=1 // loop_footer
      %s21 = sadd.s32 1, %s17
    $region7: #{tpu_custom_call.1} parent=1 // loop_footer_branch
      %16 = sbr.rel target = $region3
    $region8: #{tpu_custom_call.1} parent=1 // loop_exit
      _
    %644 = vsyncpa [#allocation3], 1
    %s645 = scalar_lea.sflag [#allocation3], 1
    %646 = vsyncpa %s645, 1
    %647 = vsyncpa [#allocation6], 1
    %648 = vsyncpa [#allocation4], 1
    %s649 = scalar_lea.sflag [#allocation4], 1
    %650 = vsyncpa %s649, 1

</llo_original>
